<compile_context>
chip_gen: v7x
topology: tpu7x:2x2x1
jax: 0.10.0
libtpu: 0.0.40
codegen_flags: <defaults>
</compile_context>

<pallas_src>
import jax
import jax.numpy as jnp
from jax.experimental import pallas as pl
from jax.experimental.pallas import tpu as pltpu

MAX_TILE_R = 256                           # rows of 128 lanes per (b,c) slab per step
VMEM_TILE_BUDGET = 24 * 1024 * 1024        # double-buffered input blocks
VMEM_LIMIT_BYTES = 48 * 1024 * 1024        # < 64 MiB physical on v7x, well under v5e/v6e


def _cdiv(a, b):
    return -(-a // b)


def _loss_kernel(pim_ref, tgt_ref, pwm_ref, wm_ref, pms_ref, msk_ref,
                 sq1_out, abs_out, sq3_out, bce_out,
                 acc_sq1, acc_abs, acc_sq3, acc_bce):
    j = pl.program_id(1)

    @pl.when(j == 0)
    def _():
        acc_sq1[...] = jnp.zeros_like(acc_sq1)
        acc_abs[...] = jnp.zeros_like(acc_abs)
        acc_sq3[...] = jnp.zeros_like(acc_sq3)
        acc_bce[...] = jnp.zeros_like(acc_bce)

    pim = pim_ref[...].astype(jnp.float32)     # (B, C, tile_R, 128)
    tgt = tgt_ref[...].astype(jnp.float32)
    pwm = pwm_ref[...].astype(jnp.float32)
    wm = wm_ref[...].astype(jnp.float32)
    pms = pms_ref[...].astype(jnp.float32)     # (B, 1, tile_R, 128) -> broadcasts over C
    msk = msk_ref[...].astype(jnp.float32)

    def _vreg_sum(x):
        # Reduce all leading dims into one (8, 128) partial-sum vreg.  tile_R is a
        # multiple of 8, so the reshape is tile-aligned (a view) and the reduction is
        # a chain of plain vector adds on the VPU.
        return x.reshape(-1, 8, 128).sum(axis=0)

    pim_pms = pim * pms                        # hoisted: used by d1 and recov

    # MSE(pred_im * pred_ms, target * mask)
    d1 = pim_pms - tgt * msk
    acc_sq1[...] += _vreg_sum(d1 * d1)

    # recov = denorm(pred_im*pred_ms + (1-pred_ms)*norm(target)), norm/denorm = identity
    # L1(recov, target)
    recov = pim_pms + (1.0 - pms) * tgt
    acc_abs[...] += _vreg_sum(jnp.abs(recov - tgt))

    # MSE(pred_wms * pred_ms, wm * mask)
    d3 = pwm * pms - wm * msk
    acc_sq3[...] += _vreg_sum(d3 * d3)

    # BCE(pred_ms, mask), log clamped at -100 like torch.nn.BCELoss.
    # Zero-padded tail rows (pms = msk = 0) contribute exactly 0.
    log_p = jnp.maximum(jnp.log(pms), -100.0)
    log_1mp = jnp.maximum(jnp.log(1.0 - pms), -100.0)
    acc_bce[...] += _vreg_sum(-(msk * log_p + (1.0 - msk) * log_1mp))

    # Lane-dense (8,128) partial-sum writeback, once per chunk.
    @pl.when(j == pl.num_programs(1) - 1)
    def _():
        sq1_out[...] = acc_sq1[...]
        abs_out[...] = acc_abs[...]
        sq3_out[...] = acc_sq3[...]
        bce_out[...] = acc_bce[...]


def _choose_tiling(R, per_row_bytes):
    """Pick (tile_R, n_chunks, steps) with tile_R a multiple of 8 within the VMEM budget.

    per_row_bytes: double-buffered VMEM bytes consumed per row of 128 lanes across
    all six input streams.  The grid covers R_pad = n_chunks * steps * tile_R rows;
    the caller zero-pads the inputs up to R_pad (padding contributes 0 to every sum).
    """
    cap = max(8, min(MAX_TILE_R,
                     (VMEM_TILE_BUDGET // max(per_row_bytes, 1)) // 8 * 8))
    n_chunks = 2 if R >= 16 else 1             # v7x: 2 TensorCores; exact split via padding
    steps = max(1, _cdiv(R, n_chunks * cap))
    tile_r = max(8, min(cap, _cdiv(_cdiv(R, n_chunks * steps), 8) * 8))
    steps = _cdiv(R, n_chunks * tile_r)
    return tile_r, n_chunks, steps


def losses_forward(pred_ims, target, pred_ms, mask, pred_wms, wm):
    """Inputs: pred_ims/target/pred_wms/wm: (B,C,H,W); pred_ms/mask: (B,1,H,W).
    bf16 inputs are accepted (compute stays f32 in-kernel)."""
    B, C, H, W = pred_ims.shape
    L = H * W

    imgs = [pred_ims, target, pred_wms, wm]
    msks = [pred_ms, mask]

    # Exact VMEM bytes per tile_R row (128 lanes per (b, ch) slab), double-buffered.
    # The (B, C, tile_R, 128) layout makes this formula padding-exact.
    per_row_bytes = 2 * 128 * (sum(a.dtype.itemsize for a in imgs) * B * C
                               + sum(a.dtype.itemsize for a in msks) * B)

    R = _cdiv(L, 128)
    tile_R, n_chunks, steps = _choose_tiling(R, per_row_bytes)
    R_pad = n_chunks * steps * tile_R
    L_pad = R_pad * 128

    def prep(x, ch):
        x = x.reshape(B, ch, L)                        # free (contiguous reshape)
        if L_pad != L:
            # Copy only when needed; zeros contribute 0 to all four sums.
            x = jnp.pad(x, ((0, 0), (0, 0), (0, L_pad - L)))
        return x.reshape(B, ch, R_pad, 128)

    img_ops = [prep(x, C) for x in imgs]
    msk_ops = [prep(x, 1) for x in msks]

    def _in_map(c, j):
        return (0, 0, c * steps + j, 0)

    img_spec = pl.BlockSpec((B, C, tile_R, 128), _in_map)
    msk_spec = pl.BlockSpec((B, 1, tile_R, 128), _in_map)
    out_spec = pl.BlockSpec((None, 8, 128), lambda c, j: (c, 0, 0))
    out_shape = jax.ShapeDtypeStruct((n_chunks, 8, 128), jnp.float32)

    sums = pl.pallas_call(
        _loss_kernel,
        out_shape=(out_shape, out_shape, out_shape, out_shape),
        grid_spec=pltpu.PrefetchScalarGridSpec(
            num_scalar_prefetch=0,
            grid=(n_chunks, steps),
            in_specs=[img_spec, img_spec, img_spec, img_spec, msk_spec, msk_spec],
            out_specs=(out_spec, out_spec, out_spec, out_spec),
            scratch_shapes=[pltpu.VMEM((8, 128), jnp.float32)] * 4,
        ),
        compiler_params=pltpu.CompilerParams(
            dimension_semantics=("parallel", "arbitrary"),
            vmem_limit_bytes=VMEM_LIMIT_BYTES,
        ),
    )(*img_ops, *msk_ops)

    # Per-chunk (8,128) partial sums -> scalars.
    s_sq1, s_abs2, s_sq3, s_bce = (jnp.sum(s) for s in sums)

    n_img = B * C * L        # elements of image-shaped tensors (MSE / L1 mean denom)
    n_msk = B * 1 * L        # elements of mask-shaped tensors (BCE mean denom)

    pixel_loss = (s_sq1 + s_abs2) / n_img
    att_loss = s_bce / n_msk
    wm_loss = s_sq3 / n_img
    vgg_loss = jnp.float32(0.0)
    ssim_loss = jnp.float32(0.0)
    return pixel_loss, att_loss, wm_loss, vgg_loss, ssim_loss


def _reference_forward(pred_ims, target, pred_ms, mask, pred_wms, wm):
    p1 = jnp.mean((pred_ims * pred_ms - target * mask) ** 2)
    recov = pred_ims * pred_ms + (1.0 - pred_ms) * target
    p2 = jnp.mean(jnp.abs(recov - target))
    wml = jnp.mean((pred_wms * pred_ms - wm * mask) ** 2)
    bce = jnp.mean(-(mask * jnp.maximum(jnp.log(pred_ms), -100.0)
                     + (1.0 - mask) * jnp.maximum(jnp.log(1.0 - pred_ms), -100.0)))
    return p1 + p2, bce, wml


if __name__ == "__main__":
    key = jax.random.PRNGKey(0)
    kp, kt, km, kgm, kw, kgw = jax.random.split(key, 6)

    B, C, H, W = 2, 3, 16, 16           # small shapes consistent with the module
    pred_ims = jax.random.uniform(kp, (B, C, H, W), jnp.float32)
    target = jax.random.uniform(kt, (B, C, H, W), jnp.float32)
    pred_ms = jax.nn.sigmoid(jax.random.normal(km, (B, 1, H, W), jnp.float32))   # (0,1) for BCE
    mask = (jax.random.uniform(kgm, (B, 1, H, W), jnp.float32) > 0.5).astype(jnp.float32)
    pred_wms = jax.random.uniform(kw, (B, C, H, W), jnp.float32)
    wm = jax.random.uniform(kgw, (B, C, H, W), jnp.float32)

    out = losses_forward(pred_ims, target, pred_ms, mask, pred_wms, wm)
    out = jax.block_until_ready(out)
    pixel_loss, att_loss, wm_loss, vgg_loss, ssim_loss = out

    ref_pixel, ref_att, ref_wm = _reference_forward(pred_ims, target, pred_ms, mask, pred_wms, wm)
    assert jnp.allclose(pixel_loss, ref_pixel, rtol=1e-5, atol=1e-5)
    assert jnp.allclose(att_loss, ref_att, rtol=1e-5, atol=1e-5)
    assert jnp.allclose(wm_loss, ref_wm, rtol=1e-5, atol=1e-5)
    assert float(vgg_loss) == 0.0 and float(ssim_loss) == 0.0

    print("KERNEL_OK")
</pallas_src>

<mosaic_0001>
module attributes {stable_mosaic.version = 11 : i64} {
  func.func @_loss_kernel(%arg0: i32, %arg1: i32, %arg2: memref<2x3x8x128xf32, #tpu.memory_space<vmem>>, %arg3: memref<2x3x8x128xf32, #tpu.memory_space<vmem>>, %arg4: memref<2x3x8x128xf32, #tpu.memory_space<vmem>>, %arg5: memref<2x3x8x128xf32, #tpu.memory_space<vmem>>, %arg6: memref<2x1x8x128xf32, #tpu.memory_space<vmem>>, %arg7: memref<2x1x8x128xf32, #tpu.memory_space<vmem>>, %arg8: memref<1x8x128xf32, #tpu.memory_space<vmem>>, %arg9: memref<1x8x128xf32, #tpu.memory_space<vmem>>, %arg10: memref<1x8x128xf32, #tpu.memory_space<vmem>>, %arg11: memref<1x8x128xf32, #tpu.memory_space<vmem>>, %arg12: memref<8x128xf32, #tpu.memory_space<vmem>>, %arg13: memref<8x128xf32, #tpu.memory_space<vmem>>, %arg14: memref<8x128xf32, #tpu.memory_space<vmem>>, %arg15: memref<8x128xf32, #tpu.memory_space<vmem>>) attributes {dimension_semantics = [#tpu.dimension_semantics<parallel>, #tpu.dimension_semantics<arbitrary>], iteration_bounds = array<i64: 1, 1>, scalar_prefetch = 0 : i64, scratch_operands = 4 : i64, tpu.core_type = #tpu.core_type<tc>, window_params = [{transform_indices = @transform_0, window_bounds = array<i64: 2, 3, 8, 128>}, {transform_indices = @transform_1, window_bounds = array<i64: 2, 3, 8, 128>}, {transform_indices = @transform_2, window_bounds = array<i64: 2, 3, 8, 128>}, {transform_indices = @transform_3, window_bounds = array<i64: 2, 3, 8, 128>}, {transform_indices = @transform_4, window_bounds = array<i64: 2, 1, 8, 128>}, {transform_indices = @transform_5, window_bounds = array<i64: 2, 1, 8, 128>}, {transform_indices = @transform_6, window_bounds = array<i64: 1, 8, 128>}, {transform_indices = @transform_7, window_bounds = array<i64: 1, 8, 128>}, {transform_indices = @transform_8, window_bounds = array<i64: 1, 8, 128>}, {transform_indices = @transform_9, window_bounds = array<i64: 1, 8, 128>}]} {
    %c0_i32 = arith.constant 0 : i32
    %0 = arith.cmpi eq, %arg1, %c0_i32 : i32
    %1 = arith.extui %0 : i1 to i32
    %c0_i32_0 = arith.constant 0 : i32
    %2 = arith.cmpi ne, %1, %c0_i32_0 : i32
    scf.if %2 {
      %cst_51 = arith.constant 0.000000e+00 : f32
      %66 = vector.broadcast %cst_51 : f32 to vector<8x128xf32>
      %c0_52 = arith.constant 0 : index
      %c0_53 = arith.constant 0 : index
      %67 = vector.load %arg12[%c0_52, %c0_53] : memref<8x128xf32, #tpu.memory_space<vmem>>, vector<8x128xf32>
      tpu.vector_store %arg12[%c0_52, %c0_53], %66 {strides = array<i32>} : memref<8x128xf32, #tpu.memory_space<vmem>>, vector<8x128xf32>,
      %cst_54 = arith.constant 0.000000e+00 : f32
      %68 = vector.broadcast %cst_54 : f32 to vector<8x128xf32>
      %c0_55 = arith.constant 0 : index
      %c0_56 = arith.constant 0 : index
      %69 = vector.load %arg13[%c0_55, %c0_56] : memref<8x128xf32, #tpu.memory_space<vmem>>, vector<8x128xf32>
      tpu.vector_store %arg13[%c0_55, %c0_56], %68 {strides = array<i32>} : memref<8x128xf32, #tpu.memory_space<vmem>>, vector<8x128xf32>,
      %cst_57 = arith.constant 0.000000e+00 : f32
      %70 = vector.broadcast %cst_57 : f32 to vector<8x128xf32>
      %c0_58 = arith.constant 0 : index
      %c0_59 = arith.constant 0 : index
      %71 = vector.load %arg14[%c0_58, %c0_59] : memref<8x128xf32, #tpu.memory_space<vmem>>, vector<8x128xf32>
      tpu.vector_store %arg14[%c0_58, %c0_59], %70 {strides = array<i32>} : memref<8x128xf32, #tpu.memory_space<vmem>>, vector<8x128xf32>,
      %cst_60 = arith.constant 0.000000e+00 : f32
      %72 = vector.broadcast %cst_60 : f32 to vector<8x128xf32>
      %c0_61 = arith.constant 0 : index
      %c0_62 = arith.constant 0 : index
      %73 = vector.load %arg15[%c0_61, %c0_62] : memref<8x128xf32, #tpu.memory_space<vmem>>, vector<8x128xf32>
      tpu.vector_store %arg15[%c0_61, %c0_62], %72 {strides = array<i32>} : memref<8x128xf32, #tpu.memory_space<vmem>>, vector<8x128xf32>,
    } else {
    }
    %c0 = arith.constant 0 : index
    %c0_1 = arith.constant 0 : index
    %c0_2 = arith.constant 0 : index
    %c0_3 = arith.constant 0 : index
    %3 = vector.load %arg2[%c0, %c0_1, %c0_2, %c0_3] : memref<2x3x8x128xf32, #tpu.memory_space<vmem>>, vector<2x3x8x128xf32>
    %c0_4 = arith.constant 0 : index
    %c0_5 = arith.constant 0 : index
    %c0_6 = arith.constant 0 : index
    %c0_7 = arith.constant 0 : index
    %4 = vector.load %arg3[%c0_4, %c0_5, %c0_6, %c0_7] : memref<2x3x8x128xf32, #tpu.memory_space<vmem>>, vector<2x3x8x128xf32>
    %c0_8 = arith.constant 0 : index
    %c0_9 = arith.constant 0 : index
    %c0_10 = arith.constant 0 : index
    %c0_11 = arith.constant 0 : index
    %5 = vector.load %arg4[%c0_8, %c0_9, %c0_10, %c0_11] : memref<2x3x8x128xf32, #tpu.memory_space<vmem>>, vector<2x3x8x128xf32>
    %c0_12 = arith.constant 0 : index
    %c0_13 = arith.constant 0 : index
    %c0_14 = arith.constant 0 : index
    %c0_15 = arith.constant 0 : index
    %6 = vector.load %arg5[%c0_12, %c0_13, %c0_14, %c0_15] : memref<2x3x8x128xf32, #tpu.memory_space<vmem>>, vector<2x3x8x128xf32>
    %c0_16 = arith.constant 0 : index
    %c0_17 = arith.constant 0 : index
    %c0_18 = arith.constant 0 : index
    %c0_19 = arith.constant 0 : index
    %7 = vector.load %arg6[%c0_16, %c0_17, %c0_18, %c0_19] : memref<2x1x8x128xf32, #tpu.memory_space<vmem>>, vector<2x1x8x128xf32>
    %c0_20 = arith.constant 0 : index
    %c0_21 = arith.constant 0 : index
    %c0_22 = arith.constant 0 : index
    %c0_23 = arith.constant 0 : index
    %8 = vector.load %arg7[%c0_20, %c0_21, %c0_22, %c0_23] : memref<2x1x8x128xf32, #tpu.memory_space<vmem>>, vector<2x1x8x128xf32>
    %9 = vector.broadcast %7 : vector<2x1x8x128xf32> to vector<2x3x8x128xf32>
    %10 = arith.mulf %3, %9 : vector<2x3x8x128xf32>
    %11 = vector.broadcast %8 : vector<2x1x8x128xf32> to vector<2x3x8x128xf32>
    %12 = arith.mulf %4, %11 : vector<2x3x8x128xf32>
    %13 = arith.subf %10, %12 : vector<2x3x8x128xf32>
    %c0_24 = arith.constant 0 : index
    %c0_25 = arith.constant 0 : index
    %14 = vector.load %arg12[%c0_24, %c0_25] : memref<8x128xf32, #tpu.memory_space<vmem>>, vector<8x128xf32>
    %15 = arith.mulf %13, %13 : vector<2x3x8x128xf32>
    %16 = vector.shape_cast %15 : vector<2x3x8x128xf32> to vector<6x8x128xf32>
    %cst = arith.constant dense<0.000000e+00> : vector<8x128xf32>
    %17 = vector.multi_reduction <add>, %16, %cst [0] : vector<6x8x128xf32> to vector<8x128xf32>
    %18 = arith.addf %14, %17 : vector<8x128xf32>
    %c0_26 = arith.constant 0 : index
    %c0_27 = arith.constant 0 : index
    %19 = vector.load %arg12[%c0_26, %c0_27] : memref<8x128xf32, #tpu.memory_space<vmem>>, vector<8x128xf32>
    tpu.vector_store %arg12[%c0_26, %c0_27], %18 {strides = array<i32>} : memref<8x128xf32, #tpu.memory_space<vmem>>, vector<8x128xf32>,
    %cst_28 = arith.constant 1.000000e+00 : f32
    %20 = vector.broadcast %cst_28 : f32 to vector<2x1x8x128xf32>
    %21 = arith.subf %20, %7 : vector<2x1x8x128xf32>
    %22 = vector.broadcast %21 : vector<2x1x8x128xf32> to vector<2x3x8x128xf32>
    %23 = arith.mulf %22, %4 : vector<2x3x8x128xf32>
    %24 = arith.addf %10, %23 : vector<2x3x8x128xf32>
    %c0_29 = arith.constant 0 : index
    %c0_30 = arith.constant 0 : index
    %25 = vector.load %arg13[%c0_29, %c0_30] : memref<8x128xf32, #tpu.memory_space<vmem>>, vector<8x128xf32>
    %26 = arith.subf %24, %4 : vector<2x3x8x128xf32>
    %27 = math.absf %26 : vector<2x3x8x128xf32>
    %28 = vector.shape_cast %27 : vector<2x3x8x128xf32> to vector<6x8x128xf32>
    %cst_31 = arith.constant dense<0.000000e+00> : vector<8x128xf32>
    %29 = vector.multi_reduction <add>, %28, %cst_31 [0] : vector<6x8x128xf32> to vector<8x128xf32>
    %30 = arith.addf %25, %29 : vector<8x128xf32>
    %c0_32 = arith.constant 0 : index
    %c0_33 = arith.constant 0 : index
    %31 = vector.load %arg13[%c0_32, %c0_33] : memref<8x128xf32, #tpu.memory_space<vmem>>, vector<8x128xf32>
    tpu.vector_store %arg13[%c0_32, %c0_33], %30 {strides = array<i32>} : memref<8x128xf32, #tpu.memory_space<vmem>>, vector<8x128xf32>,
    %32 = vector.broadcast %7 : vector<2x1x8x128xf32> to vector<2x3x8x128xf32>
    %33 = arith.mulf %5, %32 : vector<2x3x8x128xf32>
    %34 = vector.broadcast %8 : vector<2x1x8x128xf32> to vector<2x3x8x128xf32>
    %35 = arith.mulf %6, %34 : vector<2x3x8x128xf32>
    %36 = arith.subf %33, %35 : vector<2x3x8x128xf32>
    %c0_34 = arith.constant 0 : index
    %c0_35 = arith.constant 0 : index
    %37 = vector.load %arg14[%c0_34, %c0_35] : memref<8x128xf32, #tpu.memory_space<vmem>>, vector<8x128xf32>
    %38 = arith.mulf %36, %36 : vector<2x3x8x128xf32>
    %39 = vector.shape_cast %38 : vector<2x3x8x128xf32> to vector<6x8x128xf32>
    %cst_36 = arith.constant dense<0.000000e+00> : vector<8x128xf32>
    %40 = vector.multi_reduction <add>, %39, %cst_36 [0] : vector<6x8x128xf32> to vector<8x128xf32>
    %41 = arith.addf %37, %40 : vector<8x128xf32>
    %c0_37 = arith.constant 0 : index
    %c0_38 = arith.constant 0 : index
    %42 = vector.load %arg14[%c0_37, %c0_38] : memref<8x128xf32, #tpu.memory_space<vmem>>, vector<8x128xf32>
    tpu.vector_store %arg14[%c0_37, %c0_38], %41 {strides = array<i32>} : memref<8x128xf32, #tpu.memory_space<vmem>>, vector<8x128xf32>,
    %43 = math.log %7 : vector<2x1x8x128xf32>
    %cst_39 = arith.constant -1.000000e+02 : f32
    %44 = vector.broadcast %cst_39 : f32 to vector<2x1x8x128xf32>
    %45 = arith.maximumf %43, %44 : vector<2x1x8x128xf32>
    %cst_40 = arith.constant 1.000000e+00 : f32
    %46 = vector.broadcast %cst_40 : f32 to vector<2x1x8x128xf32>
    %47 = arith.subf %46, %7 : vector<2x1x8x128xf32>
    %48 = math.log %47 : vector<2x1x8x128xf32>
    %cst_41 = arith.constant -1.000000e+02 : f32
    %49 = vector.broadcast %cst_41 : f32 to vector<2x1x8x128xf32>
    %50 = arith.maximumf %48, %49 : vector<2x1x8x128xf32>
    %c0_42 = arith.constant 0 : index
    %c0_43 = arith.constant 0 : index
    %51 = vector.load %arg15[%c0_42, %c0_43] : memref<8x128xf32, #tpu.memory_space<vmem>>, vector<8x128xf32>
    %52 = arith.mulf %8, %45 : vector<2x1x8x128xf32>
    %cst_44 = arith.constant 1.000000e+00 : f32
    %53 = vector.broadcast %cst_44 : f32 to vector<2x1x8x128xf32>
    %54 = arith.subf %53, %8 : vector<2x1x8x128xf32>
    %55 = arith.mulf %54, %50 : vector<2x1x8x128xf32>
    %56 = arith.addf %52, %55 : vector<2x1x8x128xf32>
    %cst_45 = arith.constant 0.000000e+00 : f32
    %57 = vector.broadcast %cst_45 : f32 to vector<2x1x8x128xf32>
    %58 = arith.subf %57, %56 : vector<2x1x8x128xf32>
    %59 = vector.shape_cast %58 : vector<2x1x8x128xf32> to vector<2x8x128xf32>
    %cst_46 = arith.constant dense<0.000000e+00> : vector<8x128xf32>
    %60 = vector.multi_reduction <add>, %59, %cst_46 [0] : vector<2x8x128xf32> to vector<8x128xf32>
    %61 = arith.addf %51, %60 : vector<8x128xf32>
    %c0_47 = arith.constant 0 : index
    %c0_48 = arith.constant 0 : index
    %62 = vector.load %arg15[%c0_47, %c0_48] : memref<8x128xf32, #tpu.memory_space<vmem>>, vector<8x128xf32>
    tpu.vector_store %arg15[%c0_47, %c0_48], %61 {strides = array<i32>} : memref<8x128xf32, #tpu.memory_space<vmem>>, vector<8x128xf32>,
    %c0_i32_49 = arith.constant 0 : i32
    %63 = arith.cmpi eq, %arg1, %c0_i32_49 : i32
    %64 = arith.extui %63 : i1 to i32
    %c0_i32_50 = arith.constant 0 : i32
    %65 = arith.cmpi ne, %64, %c0_i32_50 : i32
    scf.if %65 {
      %c0_51 = arith.constant 0 : index
      %c0_52 = arith.constant 0 : index
      %66 = vector.load %arg12[%c0_51, %c0_52] : memref<8x128xf32, #tpu.memory_space<vmem>>, vector<8x128xf32>
      %c0_53 = arith.constant 0 : index
      %c0_54 = arith.constant 0 : index
      %c0_55 = arith.constant 0 : index
      %67 = vector.load %arg8[%c0_53, %c0_54, %c0_55] : memref<1x8x128xf32, #tpu.memory_space<vmem>>, vector<1x8x128xf32>
      %68 = vector.shape_cast %67 : vector<1x8x128xf32> to vector<8x128xf32>
      %69 = vector.shape_cast %66 : vector<8x128xf32> to vector<1x8x128xf32>
      tpu.vector_store %arg8[%c0_53, %c0_54, %c0_55], %69 {strides = array<i32>} : memref<1x8x128xf32, #tpu.memory_space<vmem>>, vector<1x8x128xf32>,
      %c0_56 = arith.constant 0 : index
      %c0_57 = arith.constant 0 : index
      %70 = vector.load %arg13[%c0_56, %c0_57] : memref<8x128xf32, #tpu.memory_space<vmem>>, vector<8x128xf32>
      %c0_58 = arith.constant 0 : index
      %c0_59 = arith.constant 0 : index
      %c0_60 = arith.constant 0 : index
      %71 = vector.load %arg9[%c0_58, %c0_59, %c0_60] : memref<1x8x128xf32, #tpu.memory_space<vmem>>, vector<1x8x128xf32>
      %72 = vector.shape_cast %71 : vector<1x8x128xf32> to vector<8x128xf32>
      %73 = vector.shape_cast %70 : vector<8x128xf32> to vector<1x8x128xf32>
      tpu.vector_store %arg9[%c0_58, %c0_59, %c0_60], %73 {strides = array<i32>} : memref<1x8x128xf32, #tpu.memory_space<vmem>>, vector<1x8x128xf32>,
      %c0_61 = arith.constant 0 : index
      %c0_62 = arith.constant 0 : index
      %74 = vector.load %arg14[%c0_61, %c0_62] : memref<8x128xf32, #tpu.memory_space<vmem>>, vector<8x128xf32>
      %c0_63 = arith.constant 0 : index
      %c0_64 = arith.constant 0 : index
      %c0_65 = arith.constant 0 : index
      %75 = vector.load %arg10[%c0_63, %c0_64, %c0_65] : memref<1x8x128xf32, #tpu.memory_space<vmem>>, vector<1x8x128xf32>
      %76 = vector.shape_cast %75 : vector<1x8x128xf32> to vector<8x128xf32>
      %77 = vector.shape_cast %74 : vector<8x128xf32> to vector<1x8x128xf32>
      tpu.vector_store %arg10[%c0_63, %c0_64, %c0_65], %77 {strides = array<i32>} : memref<1x8x128xf32, #tpu.memory_space<vmem>>, vector<1x8x128xf32>,
      %c0_66 = arith.constant 0 : index
      %c0_67 = arith.constant 0 : index
      %78 = vector.load %arg15[%c0_66, %c0_67] : memref<8x128xf32, #tpu.memory_space<vmem>>, vector<8x128xf32>
      %c0_68 = arith.constant 0 : index
      %c0_69 = arith.constant 0 : index
      %c0_70 = arith.constant 0 : index
      %79 = vector.load %arg11[%c0_68, %c0_69, %c0_70] : memref<1x8x128xf32, #tpu.memory_space<vmem>>, vector<1x8x128xf32>
      %80 = vector.shape_cast %79 : vector<1x8x128xf32> to vector<8x128xf32>
      %81 = vector.shape_cast %78 : vector<8x128xf32> to vector<1x8x128xf32>
      tpu.vector_store %arg11[%c0_68, %c0_69, %c0_70], %81 {strides = array<i32>} : memref<1x8x128xf32, #tpu.memory_space<vmem>>, vector<1x8x128xf32>,
    } else {
    }
    return
  }
  func.func @transform_0(%arg0: i32, %arg1: i32) -> (i32, i32, i32, i32) {
    %c1_i32 = arith.constant 1 : i32
    %0 = arith.muli %arg0, %c1_i32 : i32
    %1 = arith.addi %0, %arg1 : i32
    %c0_i32 = arith.constant 0 : i32
    %c0_i32_0 = arith.constant 0 : i32
    %c0_i32_1 = arith.constant 0 : i32
    %c0_i32_2 = arith.constant 0 : i32
    return %c0_i32, %c0_i32_0, %1, %c0_i32_1 : i32, i32, i32, i32
  }
  func.func @transform_1(%arg0: i32, %arg1: i32) -> (i32, i32, i32, i32) {
    %c1_i32 = arith.constant 1 : i32
    %0 = arith.muli %arg0, %c1_i32 : i32
    %1 = arith.addi %0, %arg1 : i32
    %c0_i32 = arith.constant 0 : i32
    %c0_i32_0 = arith.constant 0 : i32
    %c0_i32_1 = arith.constant 0 : i32
    %c0_i32_2 = arith.constant 0 : i32
    return %c0_i32, %c0_i32_0, %1, %c0_i32_1 : i32, i32, i32, i32
  }
  func.func @transform_2(%arg0: i32, %arg1: i32) -> (i32, i32, i32, i32) {
    %c1_i32 = arith.constant 1 : i32
    %0 = arith.muli %arg0, %c1_i32 : i32
    %1 = arith.addi %0, %arg1 : i32
    %c0_i32 = arith.constant 0 : i32
    %c0_i32_0 = arith.constant 0 : i32
    %c0_i32_1 = arith.constant 0 : i32
    %c0_i32_2 = arith.constant 0 : i32
    return %c0_i32, %c0_i32_0, %1, %c0_i32_1 : i32, i32, i32, i32
  }
  func.func @transform_3(%arg0: i32, %arg1: i32) -> (i32, i32, i32, i32) {
    %c1_i32 = arith.constant 1 : i32
    %0 = arith.muli %arg0, %c1_i32 : i32
    %1 = arith.addi %0, %arg1 : i32
    %c0_i32 = arith.constant 0 : i32
    %c0_i32_0 = arith.constant 0 : i32
    %c0_i32_1 = arith.constant 0 : i32
    %c0_i32_2 = arith.constant 0 : i32
    return %c0_i32, %c0_i32_0, %1, %c0_i32_1 : i32, i32, i32, i32
  }
  func.func @transform_4(%arg0: i32, %arg1: i32) -> (i32, i32, i32, i32) {
    %c1_i32 = arith.constant 1 : i32
    %0 = arith.muli %arg0, %c1_i32 : i32
    %1 = arith.addi %0, %arg1 : i32
    %c0_i32 = arith.constant 0 : i32
    %c0_i32_0 = arith.constant 0 : i32
    %c0_i32_1 = arith.constant 0 : i32
    %c0_i32_2 = arith.constant 0 : i32
    return %c0_i32, %c0_i32_0, %1, %c0_i32_1 : i32, i32, i32, i32
  }
  func.func @transform_5(%arg0: i32, %arg1: i32) -> (i32, i32, i32, i32) {
    %c1_i32 = arith.constant 1 : i32
    %0 = arith.muli %arg0, %c1_i32 : i32
    %1 = arith.addi %0, %arg1 : i32
    %c0_i32 = arith.constant 0 : i32
    %c0_i32_0 = arith.constant 0 : i32
    %c0_i32_1 = arith.constant 0 : i32
    %c0_i32_2 = arith.constant 0 : i32
    return %c0_i32, %c0_i32_0, %1, %c0_i32_1 : i32, i32, i32, i32
  }
  func.func @transform_6(%arg0: i32, %arg1: i32) -> (i32, i32, i32) {
    %c0_i32 = arith.constant 0 : i32
    %c0_i32_0 = arith.constant 0 : i32
    %c0_i32_1 = arith.constant 0 : i32
    return %arg0, %c0_i32, %c0_i32_0 : i32, i32, i32
  }
  func.func @transform_7(%arg0: i32, %arg1: i32) -> (i32, i32, i32) {
    %c0_i32 = arith.constant 0 : i32
    %c0_i32_0 = arith.constant 0 : i32
    %c0_i32_1 = arith.constant 0 : i32
    return %arg0, %c0_i32, %c0_i32_0 : i32, i32, i32
  }
  func.func @transform_8(%arg0: i32, %arg1: i32) -> (i32, i32, i32) {
    %c0_i32 = arith.constant 0 : i32
    %c0_i32_0 = arith.constant 0 : i32
    %c0_i32_1 = arith.constant 0 : i32
    return %arg0, %c0_i32, %c0_i32_0 : i32, i32, i32
  }
  func.func @transform_9(%arg0: i32, %arg1: i32) -> (i32, i32, i32) {
    %c0_i32 = arith.constant 0 : i32
    %c0_i32_0 = arith.constant 0 : i32
    %c0_i32_1 = arith.constant 0 : i32
    return %arg0, %c0_i32, %c0_i32_0 : i32, i32, i32
  }
}

</mosaic_0001>

<llo_original>
// kernel: tpu_custom_call.1
$region0: #{tpu_custom_call.1}
  #allocation0 [shape = 'u32[]', space=smem, size = 0x4, offset = 0x4, fixed_abs, tag = 'smem constant byte address 0x4 - core index']
  #allocation1 [shape = 'u32[144,128]{1,0:T(1,128)}', space=vmem, size = 0x12000, scoped, tag = 'internal scratch']
  #allocation2 [shape = 'f32[8,128]{1,0:T(8,128)}', space=vmem, size = 0x1000, scoped, tag = 'scratch operand']
  #allocation3 [shape = 'f32[8,128]{1,0:T(8,128)}', space=vmem, size = 0x1000, scoped, tag = 'scratch operand']
  #allocation4 [shape = 'f32[8,128]{1,0:T(8,128)}', space=vmem, size = 0x1000, scoped, tag = 'scratch operand']
  #allocation5 [shape = 'f32[8,128]{1,0:T(8,128)}', space=vmem, size = 0x1000, scoped, tag = 'scratch operand']
  %s0 = inlined_call_operand.hbm [shape: f32[2,3,8,128], index: 0, kind: input, shape index: {}]
  %s1 = inlined_call_operand.hbm [shape: f32[2,3,8,128], index: 1, kind: input, shape index: {}]
  %s2 = inlined_call_operand.hbm [shape: f32[2,3,8,128], index: 2, kind: input, shape index: {}]
  %s3 = inlined_call_operand.hbm [shape: f32[2,3,8,128], index: 3, kind: input, shape index: {}]
  %s4 = inlined_call_operand.hbm [shape: f32[2,1,8,128], index: 4, kind: input, shape index: {}]
  %s5 = inlined_call_operand.vmem [shape: f32[2,1,8,128], index: 5, kind: input, shape index: {}]
  %s6 = inlined_call_operand.hbm [shape: f32[1,8,128], index: 6, kind: output, shape index: {0}]
  %s7 = inlined_call_operand.hbm [shape: f32[1,8,128], index: 7, kind: output, shape index: {1}]
  %s8 = inlined_call_operand.hbm [shape: f32[1,8,128], index: 8, kind: output, shape index: {2}]
  %s9 = inlined_call_operand.hbm [shape: f32[1,8,128], index: 9, kind: output, shape index: {3}]
  %10 = xla_tuple %s6, %s7, %s8, %s9
  %s11 = sld [smem:[#allocation0]]
  $region86: #{tpu_custom_call.1} parent=0
    _
  %s13 = ssub.s32 1, %s11
  %s14 = scalar_select 0, %s13, %s11
  $region1: #{tpu_custom_call.1} parent=0
    #allocation6 [shape = 'u8[24576]{0}', space=vmem, size = 0x6000, scoped, tag = 'input window, operand 0, single buffered']
    #allocation7 [shape = 's32[1]{0}', space=sflag, size = 0x4, scoped, tag = 'scoped memory for tpu_custom_call.1']
    #allocation8 [shape = 's32[1]{0}', space=sflag, size = 0x4, scoped, tag = 'scoped memory for tpu_custom_call.1']
    #allocation9 [shape = 'u8[24576]{0}', space=vmem, size = 0x6000, scoped, tag = 'input window, operand 1, single buffered']
    #allocation10 [shape = 's32[1]{0}', space=sflag, size = 0x4, scoped, tag = 'scoped memory for tpu_custom_call.1']
    #allocation11 [shape = 'u8[24576]{0}', space=vmem, size = 0x6000, scoped, tag = 'input window, operand 2, single buffered']
    #allocation12 [shape = 'u8[24576]{0}', space=vmem, size = 0x6000, scoped, tag = 'input window, operand 3, single buffered']
    #allocation13 [shape = 's32[1]{0}', space=sflag, size = 0x4, scoped, tag = 'scoped memory for tpu_custom_call.1']
    #allocation14 [shape = 'u8[8192]{0}', space=vmem, size = 0x2000, scoped, tag = 'input window, operand 4, single buffered']
    #allocation15 [shape = 'u8[4096]{0}', space=vmem, size = 0x1000, scoped, tag = 'output window, operand 0, single buffered']
    #allocation16 [shape = 'u8[4096]{0}', space=vmem, size = 0x1000, scoped, tag = 'output window, operand 1, single buffered']
    #allocation17 [shape = 's32[1]{0}', space=sflag, size = 0x4, scoped, tag = 'scoped memory for tpu_custom_call.1']
    #allocation18 [shape = 'u8[4096]{0}', space=vmem, size = 0x1000, scoped, tag = 'output window, operand 2, single buffered']
    #allocation19 [shape = 'u8[4096]{0}', space=vmem, size = 0x1000, scoped, tag = 'output window, operand 3, single buffered']
    #allocation20 [shape = 's32[1]{0}', space=sflag, size = 0x4, scoped, tag = 'scoped memory for tpu_custom_call.1']
    %15 = vsyncpa [#allocation7], 0
    %16 = vsyncpa [#allocation10], 0
    %17 = vsyncpa [#allocation13], 0
    %18 = vsyncpa [#allocation8], 0
    %19 = vsyncpa [#allocation17], 0
    %20 = vsyncpa [#allocation20], 0
    // Predicated region
    $region2: #{tpu_custom_call.1} parent=1 // pred_check
      _
    $region3: #{tpu_custom_call.1} parent=1 // pred_check_branch
      %22 = sbr.rel (0) target = $region5
    $region4: #{tpu_custom_call.1} parent=1 // pred_region
      %s23 = sadd.s32 0, 0
      %s25 = ssub.s32 768, 768
      %26 = vsyncadd [#allocation7], %s25
      %s27 = smul.addr %s23, 128
      %s28 = scalar_lea.hbm %s0, %s27
      %s29 = sshll.u32 [#allocation6], 4
      %s30 = int_to_ptr.vmem [resolvable:$true] %s29
      %35 = dma.hbm_to_vmem [thread:$0]  %s28, 768, %s30, [#allocation7], 128, 128, 8
    $region5: #{tpu_custom_call.1} parent=1 // pred_fallthru
      _
    // Predicated region
    $region6: #{tpu_custom_call.1} parent=1 // pred_check
      _
    $region7: #{tpu_custom_call.1} parent=1 // pred_check_branch
      %37 = sbr.rel (0) target = $region9
    $region8: #{tpu_custom_call.1} parent=1 // pred_region
      %s38 = sadd.s32 0, 0
      %s40 = ssub.s32 768, 768
      %41 = vsyncadd [#allocation10], %s40
      %s42 = smul.addr %s38, 128
      %s43 = scalar_lea.hbm %s1, %s42
      %s44 = sshll.u32 [#allocation9], 4
      %s45 = int_to_ptr.vmem [resolvable:$true] %s44
      %50 = dma.hbm_to_vmem [thread:$0]  %s43, 768, %s45, [#allocation10], 128, 128, 8
    $region9: #{tpu_custom_call.1} parent=1 // pred_fallthru
      _
    // Predicated region
    $region10: #{tpu_custom_call.1} parent=1 // pred_check
      _
    $region11: #{tpu_custom_call.1} parent=1 // pred_check_branch
      %52 = sbr.rel (0) target = $region13
    $region12: #{tpu_custom_call.1} parent=1 // pred_region
      %s53 = sadd.s32 0, 0
      %s55 = ssub.s32 768, 768
      %56 = vsyncadd [#allocation10], %s55
      %s57 = smul.addr %s53, 128
      %s58 = scalar_lea.hbm %s2, %s57
      %s59 = sshll.u32 [#allocation11], 4
      %s60 = int_to_ptr.vmem [resolvable:$true] %s59
      %65 = dma.hbm_to_vmem [thread:$0]  %s58, 768, %s60, [#allocation10], 128, 128, 8
    $region13: #{tpu_custom_call.1} parent=1 // pred_fallthru
      _
    // Predicated region
    $region14: #{tpu_custom_call.1} parent=1 // pred_check
      _
    $region15: #{tpu_custom_call.1} parent=1 // pred_check_branch
      %67 = sbr.rel (0) target = $region17
    $region16: #{tpu_custom_call.1} parent=1 // pred_region
      %s68 = sadd.s32 0, 0
      %s70 = ssub.s32 768, 768
      %71 = vsyncadd [#allocation13], %s70
      %s72 = smul.addr %s68, 128
      %s73 = scalar_lea.hbm %s3, %s72
      %s74 = sshll.u32 [#allocation12], 4
      %s75 = int_to_ptr.vmem [resolvable:$true] %s74
      %80 = dma.hbm_to_vmem [thread:$0]  %s73, 768, %s75, [#allocation13], 128, 128, 8
    $region17: #{tpu_custom_call.1} parent=1 // pred_fallthru
      _
    // Predicated region
    $region18: #{tpu_custom_call.1} parent=1 // pred_check
      _
    $region19: #{tpu_custom_call.1} parent=1 // pred_check_branch
      %82 = sbr.rel (0) target = $region21
    $region20: #{tpu_custom_call.1} parent=1 // pred_region
      %s83 = sadd.s32 0, 0
      %s85 = ssub.s32 256, 256
      %86 = vsyncadd [#allocation13], %s85
      %s87 = smul.addr %s83, 128
      %s88 = scalar_lea.hbm %s4, %s87
      %s89 = sshll.u32 [#allocation14], 4
      %s90 = int_to_ptr.vmem [resolvable:$true] %s89
      %95 = dma.hbm_to_vmem [thread:$0]  %s88, 256, %s90, [#allocation13], 128, 128, 8
    $region21: #{tpu_custom_call.1} parent=1 // pred_fallthru
      _
    // Predicated region
    $region22: #{tpu_custom_call.1} parent=1 // pred_check
      _
    $region23: #{tpu_custom_call.1} parent=1 // pred_check_branch
      %97 = sbr.rel (0) target = $region25
    $region24: #{tpu_custom_call.1} parent=1 // pred_region
      %s98 = sadd.s32 0, 0
      %p99 = scmp.lt.s32.totalorder %s98, 0
      %s100 = scalar_select %p99, %s98, 0
      %s101 = smul.addr %s100, 8
      %s102 = scalar_lea.vmem %s5, %s101
      %s103 = sadd.s32 0, 0
    $region25: #{tpu_custom_call.1} parent=1 // pred_fallthru
      _
    // Predicated region
    $region26: #{tpu_custom_call.1} parent=1 // pred_check
      _
    $region27: #{tpu_custom_call.1} parent=1 // pred_check_branch
      %105 = sbr.rel (0) target = $region29
    $region28: #{tpu_custom_call.1} parent=1 // pred_region
      %106 = dma.done [#allocation7], 768
    $region29: #{tpu_custom_call.1} parent=1 // pred_fallthru
      _
    // Predicated region
    $region30: #{tpu_custom_call.1} parent=1 // pred_check
      _
    $region31: #{tpu_custom_call.1} parent=1 // pred_check_branch
      %108 = sbr.rel (0) target = $region33
    $region32: #{tpu_custom_call.1} parent=1 // pred_region
      %109 = dma.done [#allocation10], 768
    $region33: #{tpu_custom_call.1} parent=1 // pred_fallthru
      _
    // Predicated region
    $region34: #{tpu_custom_call.1} parent=1 // pred_check
      _
    $region35: #{tpu_custom_call.1} parent=1 // pred_check_branch
      %111 = sbr.rel (0) target = $region37
    $region36: #{tpu_custom_call.1} parent=1 // pred_region
      %112 = dma.done [#allocation10], 768
    $region37: #{tpu_custom_call.1} parent=1 // pred_fallthru
      _
    // Predicated region
    $region38: #{tpu_custom_call.1} parent=1 // pred_check
      _
    $region39: #{tpu_custom_call.1} parent=1 // pred_check_branch
      %114 = sbr.rel (0) target = $region41
    $region40: #{tpu_custom_call.1} parent=1 // pred_region
      %115 = dma.done [#allocation13], 768
    $region41: #{tpu_custom_call.1} parent=1 // pred_fallthru
      _
    // Predicated region
    $region42: #{tpu_custom_call.1} parent=1 // pred_check
      _
    $region43: #{tpu_custom_call.1} parent=1 // pred_check_branch
      %117 = sbr.rel (0) target = $region45
    $region44: #{tpu_custom_call.1} parent=1 // pred_region
      %118 = dma.done [#allocation13], 256
    $region45: #{tpu_custom_call.1} parent=1 // pred_fallthru
      _
    %s119 = sadd.s32 0, 0
    %p120 = scmp.lt.s32.totalorder %s119, 0
    %s121 = scalar_select %p120, %s119, 0
    %s122 = smul.addr %s121, 8
    %s123 = scalar_lea.vmem %s5, %s122
    %s124 = sadd.s32 0, 0
    %s125 = sadd.s32 0, 0
    %s126 = sadd.s32 0, 0
    %s127 = sadd.s32 0, 0
    %s128 = sadd.s32 0, 0
    %s129 = sadd.s32 0, 0
    %p130 = scmp.lt.s32.totalorder %s129, 0
    %s131 = scalar_select %p130, %s129, 0
    %s132 = smul.addr %s131, 8
    %s133 = scalar_lea.vmem %s5, %s132
    %s134 = sadd.s32 0, 0
    %p135 = scmp.eq.s32.totalorder 0, 0
    // Predicated region
    $region46: #{tpu_custom_call.1} parent=1 // pred_check
      %p136 = pneg %p135
    $region47: #{tpu_custom_call.1} parent=1 // pred_check_branch
      %138 = sbr.rel (%p136) target = $region49
    $region48: #{tpu_custom_call.1} parent=1 // pred_region
      %139 = vst [vmem:[#allocation2] sm:$0xff] 0.0
      %140 = vst [vmem:[#allocation3] sm:$0xff] 0.0
      %141 = vst [vmem:[#allocation4] sm:$0xff] 0.0
      %142 = vst [vmem:[#allocation5] sm:$0xff] 0.0
    $region49: #{tpu_custom_call.1} parent=1 // pred_fallthru
      _
    %v143 = vld [vmem:[#allocation6] sm:$0xff]
    %v144 = vld [vmem:[#allocation6 + $0x8] sm:$0xff]
    %v145 = vld [vmem:[#allocation6 + $0x10] sm:$0xff]
    %v146 = vld [vmem:[#allocation6 + $0x18] sm:$0xff]
    %v147 = vld [vmem:[#allocation6 + $0x20] sm:$0xff]
    %v148 = vld [vmem:[#allocation6 + $0x28] sm:$0xff]
    %v149 = vld [vmem:[#allocation9] sm:$0xff]
    %v150 = vld [vmem:[#allocation9 + $0x8] sm:$0xff]
    %v151 = vld [vmem:[#allocation9 + $0x10] sm:$0xff]
    %v152 = vld [vmem:[#allocation9 + $0x18] sm:$0xff]
    %v153 = vld [vmem:[#allocation9 + $0x20] sm:$0xff]
    %v154 = vld [vmem:[#allocation9 + $0x28] sm:$0xff]
    %v155 = vld [vmem:[#allocation11] sm:$0xff]
    %v156 = vld [vmem:[#allocation11 + $0x8] sm:$0xff]
    %v157 = vld [vmem:[#allocation11 + $0x10] sm:$0xff]
    %v158 = vld [vmem:[#allocation11 + $0x18] sm:$0xff]
    %v159 = vld [vmem:[#allocation11 + $0x20] sm:$0xff]
    %v160 = vld [vmem:[#allocation11 + $0x28] sm:$0xff]
    %v161 = vld [vmem:[#allocation12] sm:$0xff]
    %v162 = vld [vmem:[#allocation12 + $0x8] sm:$0xff]
    %v163 = vld [vmem:[#allocation12 + $0x10] sm:$0xff]
    %v164 = vld [vmem:[#allocation12 + $0x18] sm:$0xff]
    %v165 = vld [vmem:[#allocation12 + $0x20] sm:$0xff]
    %v166 = vld [vmem:[#allocation12 + $0x28] sm:$0xff]
    %v167 = vld [vmem:[#allocation14] sm:$0xff]
    %v168 = vld [vmem:[#allocation14 + $0x8] sm:$0xff]
    %v169 = vld [vmem:[%s133] sm:$0xff]
    %v170 = vld [vmem:[%s133 + $0x8] sm:$0xff]
    %v171 = vmul.f32 %v143, %v167
    %v172 = vmul.f32 %v144, %v167
    %v173 = vmul.f32 %v145, %v167
    %v174 = vmul.f32 %v146, %v168
    %v175 = vmul.f32 %v147, %v168
    %v176 = vmul.f32 %v148, %v168
    %v177 = vmul.f32 %v149, %v169
    %v178 = vmul.f32 %v150, %v169
    %v179 = vmul.f32 %v151, %v169
    %v180 = vmul.f32 %v152, %v170
    %v181 = vmul.f32 %v153, %v170
    %v182 = vmul.f32 %v154, %v170
    %v183 = vsub.f32 %v171, %v177
    %v184 = vsub.f32 %v172, %v178
    %v185 = vsub.f32 %v173, %v179
    %v186 = vsub.f32 %v174, %v180
    %v187 = vsub.f32 %v175, %v181
    %v188 = vsub.f32 %v176, %v182
    %v189 = vld [vmem:[#allocation2] sm:$0xff]
    %v190 = vmul.f32 %v183, %v183
    %v191 = vmul.f32 %v184, %v184
    %v192 = vmul.f32 %v185, %v185
    %v193 = vmul.f32 %v186, %v186
    %v194 = vmul.f32 %v187, %v187
    %v195 = vmul.f32 %v188, %v188
    %v196 = vadd.f32 %v190, %v191
    %v197 = vadd.f32 %v196, %v192
    %v198 = vadd.f32 %v197, %v193
    %v199 = vadd.f32 %v198, %v194
    %v200 = vadd.f32 %v199, %v195
    %v201 = vadd.f32 %v189, %v200
    %202 = vst [vmem:[#allocation2] sm:$0xff] %v201
    %v203 = vsub.f32 1.0, %v167
    %v204 = vsub.f32 1.0, %v168
    %v205 = vmul.f32 %v203, %v149
    %v206 = vmul.f32 %v203, %v150
    %v207 = vmul.f32 %v203, %v151
    %v208 = vmul.f32 %v204, %v152
    %v209 = vmul.f32 %v204, %v153
    %v210 = vmul.f32 %v204, %v154
    %v211 = vadd.f32 %v171, %v205
    %v212 = vadd.f32 %v172, %v206
    %v213 = vadd.f32 %v173, %v207
    %v214 = vadd.f32 %v174, %v208
    %v215 = vadd.f32 %v175, %v209
    %v216 = vadd.f32 %v176, %v210
    %v217 = vld [vmem:[#allocation3] sm:$0xff]
    %v218 = vsub.f32 %v211, %v149
    %v219 = vsub.f32 %v212, %v150
    %v220 = vsub.f32 %v213, %v151
    %v221 = vsub.f32 %v214, %v152
    %v222 = vsub.f32 %v215, %v153
    %v223 = vsub.f32 %v216, %v154
    %v224 = vand.u32 2147483647, %v218
    %v225 = vand.u32 2147483647, %v219
    %v226 = vand.u32 2147483647, %v220
    %v227 = vand.u32 2147483647, %v221
    %v228 = vand.u32 2147483647, %v222
    %v229 = vand.u32 2147483647, %v223
    %v230 = vadd.f32 %v224, %v225
    %v231 = vadd.f32 %v230, %v226
    %v232 = vadd.f32 %v231, %v227
    %v233 = vadd.f32 %v232, %v228
    %v234 = vadd.f32 %v233, %v229
    %v235 = vadd.f32 %v217, %v234
    %236 = vst [vmem:[#allocation3] sm:$0xff] %v235
    %v237 = vmul.f32 %v155, %v167
    %v238 = vmul.f32 %v156, %v167
    %v239 = vmul.f32 %v157, %v167
    %v240 = vmul.f32 %v158, %v168
    %v241 = vmul.f32 %v159, %v168
    %v242 = vmul.f32 %v160, %v168
    %v243 = vmul.f32 %v161, %v169
    %v244 = vmul.f32 %v162, %v169
    %v245 = vmul.f32 %v163, %v169
    %v246 = vmul.f32 %v164, %v170
    %v247 = vmul.f32 %v165, %v170
    %v248 = vmul.f32 %v166, %v170
    %v249 = vsub.f32 %v237, %v243
    %v250 = vsub.f32 %v238, %v244
    %v251 = vsub.f32 %v239, %v245
    %v252 = vsub.f32 %v240, %v246
    %v253 = vsub.f32 %v241, %v247
    %v254 = vsub.f32 %v242, %v248
    %v255 = vld [vmem:[#allocation4] sm:$0xff]
    %v256 = vmul.f32 %v249, %v249
    %v257 = vmul.f32 %v250, %v250
    %v258 = vmul.f32 %v251, %v251
    %v259 = vmul.f32 %v252, %v252
    %v260 = vmul.f32 %v253, %v253
    %v261 = vmul.f32 %v254, %v254
    %v262 = vadd.f32 %v256, %v257
    %v263 = vadd.f32 %v262, %v258
    %v264 = vadd.f32 %v263, %v259
    %v265 = vadd.f32 %v264, %v260
    %v266 = vadd.f32 %v265, %v261
    %v267 = vadd.f32 %v255, %v266
    %268 = vst [vmem:[#allocation4] sm:$0xff] %v267
    %v269 = vlog2.pop %v167
    %v270 = vmul.f32 %v269, 0.6931472
    %v271 = vlog2.pop %v168
    %v272 = vmul.f32 %v271, 0.6931472
    %v273 = vmax.f32 %v270, -100.0
    %v274 = vmax.f32 %v272, -100.0
    %v275 = vlog2.pop %v203
    %v276 = vmul.f32 %v275, 0.6931472
    %v277 = vlog2.pop %v204
    %v278 = vmul.f32 %v277, 0.6931472
    %v279 = vmax.f32 %v276, -100.0
    %v280 = vmax.f32 %v278, -100.0
    %v281 = vld [vmem:[#allocation5] sm:$0xff]
    %v282 = vmul.f32 %v169, %v273
    %v283 = vmul.f32 %v170, %v274
    %v284 = vsub.f32 1.0, %v169
    %v285 = vsub.f32 1.0, %v170
    %v286 = vmul.f32 %v284, %v279
    %v287 = vmul.f32 %v285, %v280
    %v288 = vadd.f32 %v282, %v286
    %v289 = vadd.f32 %v283, %v287
    %v290 = vsub.f32 0.0, %v288
    %v291 = vsub.f32 0.0, %v289
    %v292 = vadd.f32 %v290, %v291
    %v293 = vadd.f32 %v281, %v292
    %294 = vst [vmem:[#allocation5] sm:$0xff] %v293
    // Predicated region
    $region50: #{tpu_custom_call.1} parent=1 // pred_check
      %p295 = pneg %p135
    $region51: #{tpu_custom_call.1} parent=1 // pred_check_branch
      %297 = sbr.rel (%p295) target = $region53
    $region52: #{tpu_custom_call.1} parent=1 // pred_region
      %v298 = vld [vmem:[#allocation2] sm:$0xff]
      %299 = vst [vmem:[#allocation15] sm:$0xff] %v298
      %v300 = vld [vmem:[#allocation3] sm:$0xff]
      %301 = vst [vmem:[#allocation16] sm:$0xff] %v300
      %v302 = vld [vmem:[#allocation4] sm:$0xff]
      %303 = vst [vmem:[#allocation18] sm:$0xff] %v302
      %v304 = vld [vmem:[#allocation5] sm:$0xff]
      %305 = vst [vmem:[#allocation19] sm:$0xff] %v304
    $region53: #{tpu_custom_call.1} parent=1 // pred_fallthru
      _
    // Predicated region
    $region54: #{tpu_custom_call.1} parent=1 // pred_check
      _
    $region55: #{tpu_custom_call.1} parent=1 // pred_check_branch
      %307 = sbr.rel (0) target = $region57
    $region56: #{tpu_custom_call.1} parent=1 // pred_region
      %s309 = ssub.s32 128, 128
      %310 = vsyncadd [#allocation8], %s309
      %s312 = sshll.u32 [#allocation15], 4
      %s313 = int_to_ptr.vmem [resolvable:$true] %s312
      %315 = dma.vmem_to_hbm [thread:$0]  %s313, 128, %s6, [#allocation8]
    $region57: #{tpu_custom_call.1} parent=1 // pred_fallthru
      _
    // Predicated region
    $region58: #{tpu_custom_call.1} parent=1 // pred_check
      _
    $region59: #{tpu_custom_call.1} parent=1 // pred_check_branch
      %317 = sbr.rel (0) target = $region61
    $region60: #{tpu_custom_call.1} parent=1 // pred_region
      %s319 = ssub.s32 128, 128
      %320 = vsyncadd [#allocation17], %s319
      %s322 = sshll.u32 [#allocation16], 4
      %s323 = int_to_ptr.vmem [resolvable:$true] %s322
      %325 = dma.vmem_to_hbm [thread:$0]  %s323, 128, %s7, [#allocation17]
    $region61: #{tpu_custom_call.1} parent=1 // pred_fallthru
      _
    // Predicated region
    $region62: #{tpu_custom_call.1} parent=1 // pred_check
      _
    $region63: #{tpu_custom_call.1} parent=1 // pred_check_branch
      %327 = sbr.rel (0) target = $region65
    $region64: #{tpu_custom_call.1} parent=1 // pred_region
      %s329 = ssub.s32 128, 128
      %330 = vsyncadd [#allocation17], %s329
      %s332 = sshll.u32 [#allocation18], 4
      %s333 = int_to_ptr.vmem [resolvable:$true] %s332
      %335 = dma.vmem_to_hbm [thread:$0]  %s333, 128, %s8, [#allocation17]
    $region65: #{tpu_custom_call.1} parent=1 // pred_fallthru
      _
    // Predicated region
    $region66: #{tpu_custom_call.1} parent=1 // pred_check
      _
    $region67: #{tpu_custom_call.1} parent=1 // pred_check_branch
      %337 = sbr.rel (0) target = $region69
    $region68: #{tpu_custom_call.1} parent=1 // pred_region
      %s339 = ssub.s32 128, 128
      %340 = vsyncadd [#allocation20], %s339
      %s342 = sshll.u32 [#allocation19], 4
      %s343 = int_to_ptr.vmem [resolvable:$true] %s342
      %345 = dma.vmem_to_hbm [thread:$0]  %s343, 128, %s9, [#allocation20]
    $region69: #{tpu_custom_call.1} parent=1 // pred_fallthru
      _
    // Predicated region
    $region70: #{tpu_custom_call.1} parent=1 // pred_check
      _
    $region71: #{tpu_custom_call.1} parent=1 // pred_check_branch
      %347 = sbr.rel (0) target = $region73
    $region72: #{tpu_custom_call.1} parent=1 // pred_region
      %348 = dma.done [#allocation8], 128
    $region73: #{tpu_custom_call.1} parent=1 // pred_fallthru
      _
    // Predicated region
    $region74: #{tpu_custom_call.1} parent=1 // pred_check
      _
    $region75: #{tpu_custom_call.1} parent=1 // pred_check_branch
      %350 = sbr.rel (0) target = $region77
    $region76: #{tpu_custom_call.1} parent=1 // pred_region
      %351 = dma.done [#allocation17], 128
    $region77: #{tpu_custom_call.1} parent=1 // pred_fallthru
      _
    // Predicated region
    $region78: #{tpu_custom_call.1} parent=1 // pred_check
      _
    $region79: #{tpu_custom_call.1} parent=1 // pred_check_branch
      %353 = sbr.rel (0) target = $region81
    $region80: #{tpu_custom_call.1} parent=1 // pred_region
      %354 = dma.done [#allocation17], 128
    $region81: #{tpu_custom_call.1} parent=1 // pred_fallthru
      _
    // Predicated region
    $region82: #{tpu_custom_call.1} parent=1 // pred_check
      _
    $region83: #{tpu_custom_call.1} parent=1 // pred_check_branch
      %356 = sbr.rel (0) target = $region85
    $region84: #{tpu_custom_call.1} parent=1 // pred_region
      %357 = dma.done [#allocation20], 128
    $region85: #{tpu_custom_call.1} parent=1 // pred_fallthru
      _
    %358 = vsyncpa [#allocation7], 1
    %359 = vsyncpa [#allocation10], 1
    %360 = vsyncpa [#allocation13], 1
    %361 = vsyncpa [#allocation8], 1
    %362 = vsyncpa [#allocation17], 1
    %363 = vsyncpa [#allocation20], 1

</llo_original>
